<compile_context>
chip_gen: v5e
topology: v5e:2x2
jax: 0.10.0
libtpu: 0.0.40
codegen_flags: <defaults>
</compile_context>

<pallas_src>
import functools

import jax
import jax.numpy as jnp
from jax.experimental import pallas as pl
from jax.experimental.pallas import tpu as pltpu


# Total per-tile VMEM budget (inputs double-buffered + f32 intermediates).
# Comfortably inside every generation's scoped/physical VMEM (incl. v7x 64 MiB).
_VMEM_TILE_BUDGET = 20 * 1024 * 1024
# Keep each neg input buffer in the measured ~2-4 MiB DMA sweet spot.
_MAX_NEG_TILE_BYTES = 4 * 1024 * 1024


def _num_tensorcores():
    """Best-effort TensorCore count per device; 1 is always a correct fallback."""
    try:
        info = pltpu.get_tpu_info()
        for name in ("num_cores", "core_count", "num_tensorcores",
                     "tensorcores_per_chip", "cores_per_chip"):
            v = getattr(info, name, None)
            if isinstance(v, int) and v >= 1:
                return v
    except Exception:
        pass
    try:
        kind = jax.devices()[0].device_kind.lower()
        if ("v4" in kind) or ("v5p" in kind) or ("v7" in kind) or ("7x" in kind):
            return 2
    except Exception:
        pass
    return 1


def _listwise_loss_kernel(pos_ref, neg_ref, out_ref, acc_ref, *,
                          batch_size, block_rows, inner_steps, mask_rows):
    """One (TB,) row-tile of the listwise softmax-CE loss.

    pos_ref : (1, TB)  native-dtype, lane-dense block of positive scores
    neg_ref : (TB, N)  native-dtype block of negative scores
    out_ref : (8, 128) f32 block, per-partition partial sum (broadcast-filled)
    acc_ref : (1, 1)   f32 scratch, running partial sum of -log p_hit
    """
    c = pl.program_id(0)          # core partition (parallel axis)
    b = pl.program_id(1)          # row-tile within partition (arbitrary axis)

    @pl.when(b == 0)
    def _init():
        acc_ref[...] = jnp.zeros_like(acc_ref)

    # pos arrives lane-dense; relayout the tiny f32 vector to row layout
    # in-kernel (TB elements -- negligible vs. the (TB, N) work).
    pos = jnp.transpose(pos_ref[...].astype(jnp.float32))            # (TB, 1)

    neg = neg_ref[...]                                               # (TB, N)
    # Row max in the native dtype (ordering-preserving); cast only the small
    # per-row stat to f32 and fuse the f32 cast of neg into the exp chain --
    # no standalone full f32 copy of the (TB, N) tile is kept live.
    m = jnp.max(neg, axis=1, keepdims=True).astype(jnp.float32)      # (TB, 1)
    sum_exp = jnp.sum(jnp.exp(neg.astype(jnp.float32) - m),
                      axis=1, keepdims=True)                         # (TB, 1)
    lse_neg = m + jnp.log(sum_exp)                                   # (TB, 1)

    # -log softmax([pos | neg])[:, 0] = softplus(lse_neg - pos), stable form;
    # the concatenation is never materialized.
    x = lse_neg - pos
    nll = jnp.maximum(x, 0.0) + jnp.log(1.0 + jnp.exp(-jnp.abs(x)))  # (TB, 1)

    if mask_rows:
        # Zero out padded rows (partial last tile and clamped phantom tiles).
        logical_block = c * inner_steps + b
        row0 = logical_block * block_rows
        rows = row0 + jax.lax.broadcasted_iota(jnp.int32, nll.shape, 0)
        nll = jnp.where(rows < batch_size, nll, 0.0)

    # Scalar accumulation in a (1,1) f32 scratch; no (B,1) intermediate.
    acc_ref[...] += jnp.sum(nll, keepdims=True)                      # (1, 1)

    @pl.when(b == inner_steps - 1)
    def _finalize():
        # One full, unmasked vreg store per core partition.
        out_ref[...] = jnp.broadcast_to(acc_ref[...], (8, 128))


def listwise_loss(pos_scores, neg_scores, *, block_rows=None, num_cores=None):
    """JAX wrapper mirroring ListWiseLoss.forward.

    pos_scores: (B, 1) positive-item scores (any float dtype)
    neg_scores: (B, N) negative-item scores (any float dtype)
    returns   : scalar f32 loss = mean_b( -log softmax([pos_b | neg_b])[0] )
    """
    B, p = pos_scores.shape
    Bn, N = neg_scores.shape
    assert p == 1 and Bn == B

    pos_isz = jnp.dtype(pos_scores.dtype).itemsize
    neg_isz = jnp.dtype(neg_scores.dtype).itemsize

    # ---- Row-tile size from a VMEM byte budget (not a fixed row count). ----
    # Per-row cost: double-buffered inputs + ~3x f32 intermediates of the
    # max/exp/log chain.
    per_row_bytes = 2 * (N * neg_isz + pos_isz) + 3 * N * 4
    tb = int(_VMEM_TILE_BUDGET // max(per_row_bytes, 1))
    tb = min(tb, _MAX_NEG_TILE_BYTES // max(N * neg_isz, 1))
    if block_rows is not None:
        tb = min(tb, int(block_rows))
    # When tiled, TB must be a multiple of 128: it is the lane dim of the
    # (1, TB) pos block and the sublane dim of the (TB, N) neg block.
    tb = max(128, (tb // 128) * 128)
    TB = B if B <= tb else tb

    nblk = pl.cdiv(B, TB)                        # number of real row-tiles
    nc = num_cores if num_cores is not None else _num_tensorcores()
    nc = max(1, min(int(nc), nblk))              # core partitions (1 on 1-TC chips)
    nb = pl.cdiv(nblk, nc)                       # tiles per core partition
    mask_rows = (B % TB != 0) or (nc * nb != nblk)

    def row_block(c, b):
        # Clamp phantom tiles onto the last real tile (no OOB DMA); the
        # logical-row mask in the kernel zeroes their contribution.
        return jnp.minimum(c * nb + b, nblk - 1)

    kernel = functools.partial(
        _listwise_loss_kernel,
        batch_size=B, block_rows=TB, inner_steps=nb, mask_rows=mask_rows)

    # Lane-dense pos: (B, 1) -> (1, B) is a free reshape (same linear layout).
    pos_flat = pos_scores.reshape(1, B)

    # Tie the scoped-VMEM limit to the actual footprint (with headroom), and
    # keep it under v7x's 64 MiB physical VMEM.
    tile_vmem = (2 * (TB * N * neg_isz + TB * pos_isz)   # double-buffered inputs
                 + 3 * TB * N * 4                        # f32 intermediates / spill
                 + 2 * 8 * 128 * 4 + 4096)               # output block + scratch
    vmem_limit = int(min(max(tile_vmem + (2 << 20), 16 << 20), 48 << 20))

    out = pl.pallas_call(
        kernel,
        out_shape=jax.ShapeDtypeStruct((nc * 8, 128), jnp.float32),
        grid_spec=pltpu.PrefetchScalarGridSpec(
            num_scalar_prefetch=0,
            grid=(nc, nb),
            in_specs=[
                pl.BlockSpec((1, TB), lambda c, b: (0, row_block(c, b))),
                pl.BlockSpec((TB, N), lambda c, b: (row_block(c, b), 0)),
            ],
            out_specs=pl.BlockSpec((8, 128), lambda c, b: (c, 0)),
            scratch_shapes=[pltpu.VMEM((1, 1), jnp.float32)],
        ),
        compiler_params=pltpu.CompilerParams(
            dimension_semantics=("parallel", "arbitrary"),
            vmem_limit_bytes=vmem_limit,
        ),
        cost_estimate=pl.CostEstimate(
            flops=B * (6 * N + 12),
            transcendentals=B * (N + 3),
            bytes_accessed=B * N * neg_isz + B * pos_isz + nc * 8 * 128 * 4,
        ),
    )(pos_flat, neg_scores)

    partials = out[0::8, 0]               # (nc,) per-partition partial sums
    return jnp.sum(partials) / jnp.float32(B)


def _reference_loss(pos_scores, neg_scores):
    scores = jnp.concatenate([pos_scores, neg_scores], axis=1).astype(jnp.float32)
    log_probs = jax.nn.log_softmax(scores, axis=1)
    return -jnp.mean(log_probs[:, 0])


if __name__ == "__main__":
    key = jax.random.PRNGKey(0)
    k1, k2, k3, k4 = jax.random.split(key, 4)

    # Case 1: small f32 batch -> single full-extent tile, single partition.
    B, N = 8, 127
    pos = jax.random.normal(k1, (B, 1), dtype=jnp.float32)
    neg = jax.random.normal(k2, (B, N), dtype=jnp.float32)
    loss = jax.block_until_ready(listwise_loss(pos, neg))
    ref = jax.block_until_ready(_reference_loss(pos, neg))
    assert jnp.allclose(loss, ref, rtol=1e-5, atol=1e-5), (loss, ref)

    # Case 2: bf16 inputs, batch tiling (TB=128), partial-tile row masking,
    # core count auto-detected.
    B2, N2 = 300, 127
    pos2 = jax.random.normal(k3, (B2, 1), dtype=jnp.bfloat16)
    neg2 = jax.random.normal(k4, (B2, N2), dtype=jnp.bfloat16)
    loss2 = jax.block_until_ready(listwise_loss(pos2, neg2, block_rows=128))
    ref2 = jax.block_until_ready(_reference_loss(pos2, neg2))
    assert jnp.allclose(loss2, ref2, rtol=1e-3, atol=1e-3), (loss2, ref2)

    # Case 3: force the 2-partition "parallel" split (exercises phantom-tile
    # clamping + masking; correct on 1-TC chips too, where it just iterates).
    loss3 = jax.block_until_ready(
        listwise_loss(pos2, neg2, block_rows=128, num_cores=2))
    assert jnp.allclose(loss3, ref2, rtol=1e-3, atol=1e-3), (loss3, ref2)

    print("KERNEL_OK")
</pallas_src>

<mosaic_0001>
module attributes {stable_mosaic.version = 11 : i64} {
  func.func @_listwise_loss_kernel(%arg0: i32, %arg1: i32, %arg2: memref<1x8xf32, #tpu.memory_space<vmem>>, %arg3: memref<8x127xf32, #tpu.memory_space<vmem>>, %arg4: memref<8x128xf32, #tpu.memory_space<vmem>>, %arg5: memref<1x1xf32, #tpu.memory_space<vmem>>) attributes {dimension_semantics = [#tpu.dimension_semantics<parallel>, #tpu.dimension_semantics<arbitrary>], iteration_bounds = array<i64: 1, 1>, scalar_prefetch = 0 : i64, scratch_operands = 1 : i64, tpu.core_type = #tpu.core_type<tc>, window_params = [{transform_indices = @transform_0, window_bounds = array<i64: 1, 8>}, {transform_indices = @transform_1, window_bounds = array<i64: 8, 127>}, {transform_indices = @transform_2, window_bounds = array<i64: 8, 128>}]} {
    %c0_i32 = arith.constant 0 : i32
    %0 = arith.cmpi eq, %arg1, %c0_i32 : i32
    %1 = arith.extui %0 : i1 to i32
    %c0_i32_0 = arith.constant 0 : i32
    %2 = arith.cmpi ne, %1, %c0_i32_0 : i32
    scf.if %2 {
      %cst_15 = arith.constant 0.000000e+00 : f32
      %37 = vector.broadcast %cst_15 : f32 to vector<1x1xf32>
      %c0_16 = arith.constant 0 : index
      %c0_17 = arith.constant 0 : index
      %38 = vector.load %arg5[%c0_16, %c0_17] : memref<1x1xf32, #tpu.memory_space<vmem>>, vector<1x1xf32>
      tpu.vector_store %arg5[%c0_16, %c0_17], %37 {strides = array<i32>} : memref<1x1xf32, #tpu.memory_space<vmem>>, vector<1x1xf32>,
    } else {
    }
    %c0 = arith.constant 0 : index
    %c0_1 = arith.constant 0 : index
    %3 = vector.load %arg2[%c0, %c0_1] : memref<1x8xf32, #tpu.memory_space<vmem>>, vector<1x8xf32>
    %4 = tpu.transpose %3, [1, 0] : vector<1x8xf32> -> vector<8x1xf32>
    %c0_2 = arith.constant 0 : index
    %c0_3 = arith.constant 0 : index
    %5 = vector.load %arg3[%c0_2, %c0_3] : memref<8x127xf32, #tpu.memory_space<vmem>>, vector<8x127xf32>
    %cst = arith.constant dense<0xFF800000> : vector<8xf32>
    %6 = vector.multi_reduction <maximumf>, %5, %cst [1] : vector<8x127xf32> to vector<8xf32>
    %7 = vector.shape_cast %6 : vector<8xf32> to vector<8x1xf32>
    %8 = vector.broadcast %7 : vector<8x1xf32> to vector<8x127xf32>
    %9 = arith.subf %5, %8 : vector<8x127xf32>
    %10 = math.exp %9 : vector<8x127xf32>
    %cst_4 = arith.constant dense<0.000000e+00> : vector<8xf32>
    %11 = vector.multi_reduction <add>, %10, %cst_4 [1] : vector<8x127xf32> to vector<8xf32>
    %12 = vector.shape_cast %11 : vector<8xf32> to vector<8x1xf32>
    %13 = math.log %12 : vector<8x1xf32>
    %14 = arith.addf %7, %13 : vector<8x1xf32>
    %15 = arith.subf %14, %4 : vector<8x1xf32>
    %cst_5 = arith.constant 0.000000e+00 : f32
    %16 = vector.broadcast %cst_5 : f32 to vector<8x1xf32>
    %17 = arith.maximumf %15, %16 : vector<8x1xf32>
    %18 = math.absf %15 : vector<8x1xf32>
    %cst_6 = arith.constant 0.000000e+00 : f32
    %19 = vector.broadcast %cst_6 : f32 to vector<8x1xf32>
    %20 = arith.subf %19, %18 : vector<8x1xf32>
    %21 = math.exp %20 : vector<8x1xf32>
    %cst_7 = arith.constant 1.000000e+00 : f32
    %22 = vector.broadcast %cst_7 : f32 to vector<8x1xf32>
    %23 = arith.addf %22, %21 : vector<8x1xf32>
    %24 = math.log %23 : vector<8x1xf32>
    %25 = arith.addf %17, %24 : vector<8x1xf32>
    %c0_8 = arith.constant 0 : index
    %c0_9 = arith.constant 0 : index
    %26 = vector.load %arg5[%c0_8, %c0_9] : memref<1x1xf32, #tpu.memory_space<vmem>>, vector<1x1xf32>
    %27 = vector.shape_cast %25 : vector<8x1xf32> to vector<1x8x1xf32>
    %cst_10 = arith.constant dense<0.000000e+00> : vector<1xf32>
    %28 = vector.multi_reduction <add>, %27, %cst_10 [1, 2] : vector<1x8x1xf32> to vector<1xf32>
    %29 = vector.shape_cast %28 : vector<1xf32> to vector<1x1x1xf32>
    %30 = vector.extract %29[0, 0, 0] : f32 from vector<1x1x1xf32>
    %31 = vector.broadcast %30 : f32 to vector<1x1xf32>
    %32 = arith.addf %26, %31 : vector<1x1xf32>
    %c0_11 = arith.constant 0 : index
    %c0_12 = arith.constant 0 : index
    %33 = vector.load %arg5[%c0_11, %c0_12] : memref<1x1xf32, #tpu.memory_space<vmem>>, vector<1x1xf32>
    tpu.vector_store %arg5[%c0_11, %c0_12], %32 {strides = array<i32>} : memref<1x1xf32, #tpu.memory_space<vmem>>, vector<1x1xf32>,
    %c0_i32_13 = arith.constant 0 : i32
    %34 = arith.cmpi eq, %arg1, %c0_i32_13 : i32
    %35 = arith.extui %34 : i1 to i32
    %c0_i32_14 = arith.constant 0 : i32
    %36 = arith.cmpi ne, %35, %c0_i32_14 : i32
    scf.if %36 {
      %c0_15 = arith.constant 0 : index
      %c0_16 = arith.constant 0 : index
      %37 = vector.load %arg5[%c0_15, %c0_16] : memref<1x1xf32, #tpu.memory_space<vmem>>, vector<1x1xf32>
      %38 = vector.shape_cast %37 : vector<1x1xf32> to vector<1x1xf32>
      %39 = vector.broadcast %38 : vector<1x1xf32> to vector<8x128xf32>
      %c0_17 = arith.constant 0 : index
      %c0_18 = arith.constant 0 : index
      %40 = vector.load %arg4[%c0_17, %c0_18] : memref<8x128xf32, #tpu.memory_space<vmem>>, vector<8x128xf32>
      tpu.vector_store %arg4[%c0_17, %c0_18], %39 {strides = array<i32>} : memref<8x128xf32, #tpu.memory_space<vmem>>, vector<8x128xf32>,
    } else {
    }
    return
  }
  func.func @transform_0(%arg0: i32, %arg1: i32) -> (i32, i32) {
    %c1_i32 = arith.constant 1 : i32
    %0 = arith.muli %arg0, %c1_i32 : i32
    %1 = arith.addi %0, %arg1 : i32
    %c0_i32 = arith.constant 0 : i32
    %2 = arith.minsi %1, %c0_i32 : i32
    %c0_i32_0 = arith.constant 0 : i32
    %c0_i32_1 = arith.constant 0 : i32
    return %c0_i32_0, %2 : i32, i32
  }
  func.func @transform_1(%arg0: i32, %arg1: i32) -> (i32, i32) {
    %c1_i32 = arith.constant 1 : i32
    %0 = arith.muli %arg0, %c1_i32 : i32
    %1 = arith.addi %0, %arg1 : i32
    %c0_i32 = arith.constant 0 : i32
    %2 = arith.minsi %1, %c0_i32 : i32
    %c0_i32_0 = arith.constant 0 : i32
    %c0_i32_1 = arith.constant 0 : i32
    return %2, %c0_i32_0 : i32, i32
  }
  func.func @transform_2(%arg0: i32, %arg1: i32) -> (i32, i32) {
    %c0_i32 = arith.constant 0 : i32
    %c0_i32_0 = arith.constant 0 : i32
    return %arg0, %c0_i32 : i32, i32
  }
}

</mosaic_0001>

<llo_original>
// kernel: tpu_custom_call.1
$region0: #{tpu_custom_call.1}
  #allocation0 [shape = 'u32[]', space=smem, size = 0x4, offset = 0x4, fixed_abs, tag = 'smem constant byte address 0x4 - core index']
  #allocation1 [shape = 'u32[72,128]{1,0:T(1,128)}', space=vmem, size = 0x9000, scoped, tag = 'internal scratch']
  #allocation2 [shape = 'f32[1,1]{1,0:T(1,128)}', space=vmem, size = 0x200, scoped, tag = 'scratch operand']
  %s0 = inlined_call_operand.hbm [shape: f32[1,8], index: 0, kind: input, shape index: {}]
  %s1 = inlined_call_operand.hbm [shape: f32[8,127], index: 1, kind: input, shape index: {}]
  %s2 = inlined_call_operand.hbm [shape: f32[8,128], index: 2, kind: output, shape index: {}]
  %s3 = sld [smem:[#allocation0]]
  $region34: #{tpu_custom_call.1} parent=0
    _
  %s5 = ssub.s32 1, %s3
  %s6 = scalar_select 0, %s5, %s3
  $region1: #{tpu_custom_call.1} parent=0
    #allocation3 [shape = 'u8[512]{0}', space=vmem, size = 0x400, scoped, tag = 'input window, operand 0, single buffered']
    #allocation4 [shape = 's32[1]{0}', space=sflag, size = 0x4, scoped, tag = 'scoped memory for tpu_custom_call.1']
    #allocation5 [shape = 's32[1]{0}', space=sflag, size = 0x4, scoped, tag = 'scoped memory for tpu_custom_call.1']
    #allocation6 [shape = 'u8[4096]{0}', space=vmem, size = 0x1000, scoped, tag = 'input window, operand 1, single buffered']
    #allocation7 [shape = 's32[1]{0}', space=sflag, size = 0x4, scoped, tag = 'scoped memory for tpu_custom_call.1']
    #allocation8 [shape = 'u8[4096]{0}', space=vmem, size = 0x1000, scoped, tag = 'output window, operand 0, single buffered']
    %7 = vsyncpa [#allocation4], 0
    %8 = vsyncpa [#allocation7], 0
    %9 = vsyncpa [#allocation5], 0
    // Predicated region
    $region2: #{tpu_custom_call.1} parent=1 // pred_check
      _
    $region3: #{tpu_custom_call.1} parent=1 // pred_check_branch
      %11 = sbr.rel (0) target = $region5
    $region4: #{tpu_custom_call.1} parent=1 // pred_region
      %s12 = sadd.s32 0, 0
      %p13 = scmp.lt.s32.totalorder %s12, 0
      %s14 = scalar_select %p13, %s12, 0
      %16 = vsyncadd [#allocation4], 0
      %s17 = scalar_lea.hbm %s0, %s14
      %s19 = sshll.u32 %s17, 4
      %s20 = int_to_ptr.hbm [resolvable:$true] %s19
      %s21 = sshll.u32 [#allocation3], 4
      %s22 = int_to_ptr.vmem [resolvable:$true] %s21
      %24 = dma.hbm_to_vmem [thread:$0]  %s20, 16, %s22, [#allocation4]
    $region5: #{tpu_custom_call.1} parent=1 // pred_fallthru
      _
    // Predicated region
    $region6: #{tpu_custom_call.1} parent=1 // pred_check
      _
    $region7: #{tpu_custom_call.1} parent=1 // pred_check_branch
      %26 = sbr.rel (0) target = $region9
    $region8: #{tpu_custom_call.1} parent=1 // pred_region
      %s27 = sadd.s32 0, 0
      %p28 = scmp.lt.s32.totalorder %s27, 0
      %s29 = scalar_select %p28, %s27, 0
      %31 = vsyncadd [#allocation7], 0
      %s32 = smul.addr %s29, 8
      %s33 = scalar_lea.hbm %s1, %s32
      %s35 = sshll.u32 %s33, 4
      %s36 = int_to_ptr.hbm [resolvable:$true] %s35
      %s37 = sshll.u32 [#allocation6], 4
      %s38 = int_to_ptr.vmem [resolvable:$true] %s37
      %40 = dma.hbm_to_vmem [thread:$0]  %s36, 128, %s38, [#allocation7]
    $region9: #{tpu_custom_call.1} parent=1 // pred_fallthru
      _
    // Predicated region
    $region10: #{tpu_custom_call.1} parent=1 // pred_check
      _
    $region11: #{tpu_custom_call.1} parent=1 // pred_check_branch
      %42 = sbr.rel (0) target = $region13
    $region12: #{tpu_custom_call.1} parent=1 // pred_region
      %44 = dma.done [#allocation4], 16
    $region13: #{tpu_custom_call.1} parent=1 // pred_fallthru
      _
    // Predicated region
    $region14: #{tpu_custom_call.1} parent=1 // pred_check
      _
    $region15: #{tpu_custom_call.1} parent=1 // pred_check_branch
      %46 = sbr.rel (0) target = $region17
    $region16: #{tpu_custom_call.1} parent=1 // pred_region
      %48 = dma.done [#allocation7], 128
    $region17: #{tpu_custom_call.1} parent=1 // pred_fallthru
      _
    %s49 = sadd.s32 0, 0
    %p50 = scmp.lt.s32.totalorder %s49, 0
    %s51 = scalar_select %p50, %s49, 0
    %s52 = sadd.s32 0, 0
    %p53 = scmp.lt.s32.totalorder %s52, 0
    %s54 = scalar_select %p53, %s52, 0
    %p55 = scmp.eq.s32.totalorder 0, 0
    // Predicated region
    $region18: #{tpu_custom_call.1} parent=1 // pred_check
      %p56 = pneg %p55
    $region19: #{tpu_custom_call.1} parent=1 // pred_check_branch
      %58 = sbr.rel (%p56) target = $region21
    $region20: #{tpu_custom_call.1} parent=1 // pred_region
      %vm59 = vcmask 0
      %60 = vst.msk [vmem:[#allocation2] sm:$0x1] %vm59, 0.0
    $region21: #{tpu_custom_call.1} parent=1 // pred_fallthru
      _
    %v61 = vld [vmem:[#allocation3] sm:$0x1]
    %62 = vxpose.xlu0.b32.start [1/16] %v61, 128
    %63 = vxpose.xlu0.b32.cont [2/16] 0.0, 128
    %64 = vxpose.xlu0.b32.cont [3/16] 0.0, 128
    %65 = vxpose.xlu0.b32.cont [4/16] 0.0, 128
    %66 = vxpose.xlu0.b32.cont [5/16] 0.0, 128
    %67 = vxpose.xlu0.b32.cont [6/16] 0.0, 128
    %68 = vxpose.xlu0.b32.cont [7/16] 0.0, 128
    %69 = vxpose.xlu0.b32.cont [8/16] 0.0, 128
    %70 = vxpose.xlu0.b32.cont [9/16] 0.0, 128
    %71 = vxpose.xlu0.b32.cont [10/16] 0.0, 128
    %72 = vxpose.xlu0.b32.cont [11/16] 0.0, 128
    %73 = vxpose.xlu0.b32.cont [12/16] 0.0, 128
    %74 = vxpose.xlu0.b32.cont [13/16] 0.0, 128
    %75 = vxpose.xlu0.b32.cont [14/16] 0.0, 128
    %76 = vxpose.xlu0.b32.cont [15/16] 0.0, 128
    %77 = vxpose.xlu0.b32.end [16/16] 0.0, 128
    %v78 = vpop.trf.xlu0
    %v79 = vpop.trf.xlu0
    %v80 = vpop.trf.xlu0
    %v81 = vpop.trf.xlu0
    %v82 = vpop.trf.xlu0
    %v83 = vpop.trf.xlu0
    %v84 = vpop.trf.xlu0
    %v85 = vpop.trf.xlu0
    %v86 = vpop.trf.xlu0
    %v87 = vpop.trf.xlu0
    %v88 = vpop.trf.xlu0
    %v89 = vpop.trf.xlu0
    %v90 = vpop.trf.xlu0
    %v91 = vpop.trf.xlu0
    %v92 = vpop.trf.xlu0
    %v93 = vpop.trf.xlu0
    %v94 = vld [vmem:[#allocation6] sm:$0xff]
    %vm95 = vcmask 1039360
    %v96 = vsel %vm95, %v94, -inf
    %97 = vmax.xlane.f32.xlu0 %v96
    %v98 = vpop.xlane.xlu0 %97
    %v99 = vsub.f32 %v94, %v98
    %v100 = vmul.f32 %v99, 1.442695
    %v101 = vpow.pop %v100
    %v102 = vsel %vm95, %v101, 0.0
    %103 = vadd.xlane.f32.xlu0 %v102
    %v104 = vpop.xlane.xlu0 %103
    %v105 = vlog2.pop %v104
    %v106 = vmul.f32 %v105, 0.6931472
    %v107 = vadd.f32 %v98, %v106
    %v108 = vsub.f32 %v107, %v78
    %v109 = vmax.f32 %v108, 0.0
    %v110 = vand.u32 2147483647, %v108
    %v111 = vsub.f32 0.0, %v110
    %v112 = vmul.f32 %v111, 1.442695
    %v113 = vpow.pop %v112
    %v114 = vadd.f32 %v113, 1.0
    %v115 = vlog2.pop %v114
    %v116 = vmul.f32 %v115, 0.6931472
    %v117 = vadd.f32 %v109, %v116
    %v118 = vld [vmem:[#allocation2] sm:$0x1]
    %vm119 = vcmask 7168
    %v120 = vsel %vm119, %v117, 0.0
    %121 = vadd.xlane.f32.xlu0 %v120
    %v122 = vpop.xlane.xlu0 %121
    %v123 = vrot.slane %v122, 4
    %v124 = vadd.f32 %v122, %v123
    %v125 = vrot.slane %v124, 2
    %v126 = vadd.f32 %v124, %v125
    %v127 = vrot.slane %v126, 1
    %v128 = vadd.f32 %v126, %v127
    %s129 = vtos %v128
    %v130 = vstv %s129
    %v131 = vadd.f32 %v118, %v130
    %vm132 = vcmask 0
    %133 = vst.msk [vmem:[#allocation2] sm:$0x1] %vm132, %v131
    // Predicated region
    $region22: #{tpu_custom_call.1} parent=1 // pred_check
      %p134 = pneg %p55
    $region23: #{tpu_custom_call.1} parent=1 // pred_check_branch
      %136 = sbr.rel (%p134) target = $region25
    $region24: #{tpu_custom_call.1} parent=1 // pred_region
      %v137 = vld [vmem:[#allocation2] sm:$0x1]
      %v139 = vperm.slane %v137, 0
      %140 = vset.pattern.permute.xlu0 0
      %141 = vperm.xlu0 %140, %v139
      %v142 = vpop.permute.xlu0 %141
      %144 = vst [vmem:[#allocation8] sm:$0xff] %v142
    $region25: #{tpu_custom_call.1} parent=1 // pred_fallthru
      _
    // Predicated region
    $region26: #{tpu_custom_call.1} parent=1 // pred_check
      _
    $region27: #{tpu_custom_call.1} parent=1 // pred_check_branch
      %146 = sbr.rel (0) target = $region29
    $region28: #{tpu_custom_call.1} parent=1 // pred_region
      %148 = vsyncadd [#allocation5], 0
      %s150 = sshll.u32 [#allocation8], 4
      %s151 = int_to_ptr.vmem [resolvable:$true] %s150
      %s152 = sshll.u32 %s2, 4
      %s153 = int_to_ptr.hbm [resolvable:$true] %s152
      %155 = dma.vmem_to_hbm [thread:$0]  %s151, 128, %s153, [#allocation5]
    $region29: #{tpu_custom_call.1} parent=1 // pred_fallthru
      _
    // Predicated region
    $region30: #{tpu_custom_call.1} parent=1 // pred_check
      _
    $region31: #{tpu_custom_call.1} parent=1 // pred_check_branch
      %157 = sbr.rel (0) target = $region33
    $region32: #{tpu_custom_call.1} parent=1 // pred_region
      %159 = dma.done [#allocation5], 128
    $region33: #{tpu_custom_call.1} parent=1 // pred_fallthru
      _
    %160 = vsyncpa [#allocation4], 1
    %161 = vsyncpa [#allocation7], 1
    %162 = vsyncpa [#allocation5], 1

</llo_original>
